<compile_context>
chip_gen: v5e
topology: v5e:2x2
jax: 0.10.0
libtpu: 0.0.40
codegen_flags: <defaults>
</compile_context>

<pallas_src>
import functools

import jax
import jax.numpy as jnp
from jax.experimental import pallas as pl
from jax.experimental.pallas import tpu as pltpu


def _eib_kernel(a_ref, w_ref, gamma_ref, beta_ref, eps_ref,
                amu_ref, ixz_ref, *, nested_dim, bn_eps):
    f32 = jnp.float32
    n = nested_dim
    batch = a_ref.shape[0]
    cn = w_ref.shape[1]              # (2*output_dim) * nested_dim
    dn = amu_ref.shape[1]            # output_dim * nested_dim
    c = cn // n                      # 2*output_dim
    s = eps_ref.shape[0] // batch    # sample_size

    # --- all per-nested matmuls fused into one block-diagonal bf16 MXU matmul + ReLU ---
    act = jnp.maximum(
        jnp.dot(a_ref[...].astype(jnp.bfloat16), w_ref[...],
                preferred_element_type=f32),
        0.0)                                                     # (B, C*N) f32

    # --- BatchNorm1d, training statistics (per channel, over batch x nested) ---
    # Column j = ch*N + n.  Group-selector matrices generated in-kernel from iota
    # (no HBM traffic); the channel averaging rides the otherwise-idle MXU, so no
    # lane<->sublane relayouts are needed.  Only compares/mults -> no int division.
    j_ids = jax.lax.broadcasted_iota(jnp.int32, (cn, c), 0)
    lo = jax.lax.broadcasted_iota(jnp.int32, (cn, c), 1) * n
    g = jnp.logical_and(j_ids >= lo, j_ids < lo + n).astype(f32)      # (C*N, C)
    lo_t = jax.lax.broadcasted_iota(jnp.int32, (c, cn), 0) * n
    j_t = jax.lax.broadcasted_iota(jnp.int32, (c, cn), 1)
    gt = jnp.logical_and(j_t >= lo_t, j_t < lo_t + n).astype(f32)     # (C, C*N)

    inv_bn = 1.0 / (batch * n)
    colsum = jnp.sum(act, axis=0, keepdims=True)                      # (1, C*N)
    mean_b = jnp.dot(jnp.dot(colsum, g, preferred_element_type=f32) * inv_bn,
                     gt, preferred_element_type=f32)                  # per-channel mean
    cent = act - mean_b
    csq = jnp.sum(cent * cent, axis=0, keepdims=True)                 # (1, C*N)
    var_b = jnp.dot(jnp.dot(csq, g, preferred_element_type=f32) * inv_bn,
                    gt, preferred_element_type=f32)                   # biased, centered
    a_bn = cent * (gamma_ref[...] * jax.lax.rsqrt(var_b + bn_eps)) + beta_ref[...]

    # --- reparameterize_diagonal (mode='diag'): mean / softplus(std) halves ---
    mu = a_bn[:, :dn]                                                 # (B, D*N)
    sd = jax.nn.softplus(a_bn[:, dn:]) + 1e-10                        # (B, D*N)

    # --- E_s[ log N(z;mu,sd) - log N(z;0,1) ], z = mu + sd*eps ---
    # eps rows are sample-major: row index = s*B + b (static sublane slices).
    e0 = eps_ref[0:batch, :]
    e1 = e0
    e2 = e0 * e0
    for si in range(1, s):
        es = eps_ref[si * batch:(si + 1) * batch, :]
        e1 = e1 + es
        e2 = e2 + es * es
    inv_s = 1.0 / s
    e1 = e1 * inv_s                                                   # (B, D*N) E_s[eps]
    e2 = e2 * inv_s                                                   # (B, D*N) E_s[eps^2]
    t = (0.5 * (sd * sd - 1.0)) * e2 + (mu * sd) * e1 \
        + (0.5 * mu * mu - jnp.log(sd))                               # (B, D*N)

    amu_ref[...] = mu                                                 # BN'd mean half
    ixz_ref[...] = jnp.sum(t, axis=1, keepdims=True)                  # (B, 1)


def make_layer_eib_1dpe_nested_forward(P1, bn_gamma, bn_beta, *, bn_eps=1e-5):
    """Precompute reorganized parameters ONCE (init-time); return a jitted forward.

    P1: (nested_dim, 2*output_dim, input_dim); bn_gamma/bn_beta: (2*output_dim,).
    forward(A, eps):
      A:   (B, input_dim, nested_dim)
      eps: (sample_size, B, output_dim, nested_dim) iid N(0,1) reparameterization noise
    returns (A_output (B, output_dim, nested_dim), I_XZ (B,)).
    """
    f32 = jnp.float32
    N, C, K = P1.shape
    D = C // 2

    # Block-diagonal weight  W[k*N + n', c*N + n] = P1[n, c, k] * delta(n, n'),
    # stored bf16 (halves the single largest DMA; MXU truncates to bf16 anyway).
    # All of this runs once, outside the per-call path.
    pt = jnp.transpose(P1.astype(f32), (2, 1, 0))                 # (K, C, N)
    eye_n = jnp.eye(N, dtype=f32)
    w_bd = (pt[:, None, :, :] * eye_n[None, :, None, :]).reshape(K * N, C * N)
    w_bd = w_bd.astype(jnp.bfloat16)
    gamma_b = jnp.repeat(bn_gamma.astype(f32), N).reshape(1, C * N)
    beta_b = jnp.repeat(bn_beta.astype(f32), N).reshape(1, C * N)
    for _x in (w_bd, gamma_b, beta_b):
        _x.block_until_ready()

    kernel = functools.partial(_eib_kernel, nested_dim=N, bn_eps=bn_eps)
    vmem_spec = pl.BlockSpec(memory_space=pltpu.MemorySpace.VMEM)

    @jax.jit
    def forward(A, eps):
        B = A.shape[0]
        S = eps.shape[0]
        # Pure reshapes (no data movement): activation column = k*N + n; noise as one
        # lane-dense (S*B, D*N) slab (a single (8,128)-tiled DMA at the example shapes).
        a_flat = A.astype(f32).reshape(B, K * N)
        eps2d = eps.astype(f32).reshape(S * B, D * N)

        cost = pl.CostEstimate(
            flops=2 * B * (K * N) * (C * N) + 8 * (C * N) * C,
            transcendentals=3 * B * D * N,
            bytes_accessed=(4 * (a_flat.size + gamma_b.size + beta_b.size
                                 + eps2d.size + B * D * N + B)
                            + 2 * w_bd.size),
        )

        a_mu, ixz = pl.pallas_call(
            kernel,
            # No grid: single invocation, whole arrays resident in VMEM (no pipeline
            # prologue/epilogue or double buffering for a single step).
            in_specs=[vmem_spec] * 5,
            out_specs=(vmem_spec, vmem_spec),
            out_shape=(
                jax.ShapeDtypeStruct((B, D * N), f32),
                jax.ShapeDtypeStruct((B, 1), f32),
            ),
            cost_estimate=cost,
        )(a_flat, w_bd, gamma_b, beta_b, eps2d)

        # Pure reshapes only (column order d*N + n -> (B, D, N)).
        return a_mu.reshape(B, D, N), ixz.reshape(B)

    return forward


if __name__ == "__main__":
    # small, deterministic configuration
    BATCH_SIZE = 2
    input_dim = 32
    output_dim = 16
    nested_dim = 8           # == permutation_size1 in the torch forward
    sample_size = 4

    key = jax.random.PRNGKey(0)
    k_a, k_p, k_eps = jax.random.split(key, 3)

    # input A: (BATCH_SIZE, input_dim, nested_dim)
    A = jax.random.normal(k_a, (BATCH_SIZE, input_dim, nested_dim), jnp.float32)

    # parameter P1: uniform(-ini, ini), ini = sqrt(3 / output_dim / 2 / input_dim)
    ini = jnp.sqrt(jnp.float32(3.0 / output_dim / 2.0 / input_dim))
    P1 = (jax.random.uniform(k_p, (nested_dim, 2 * output_dim, input_dim),
                             jnp.float32) * 2.0 * ini - ini)

    # BatchNorm1d default affine params
    bn_gamma = jnp.ones((2 * output_dim,), jnp.float32)
    bn_beta = jnp.zeros((2 * output_dim,), jnp.float32)

    # reparameterization noise for dist.rsample((sample_size,)); layout (S, B, D, N)
    eps = jax.random.normal(
        k_eps, (sample_size, BATCH_SIZE, output_dim, nested_dim), jnp.float32)

    forward = make_layer_eib_1dpe_nested_forward(P1, bn_gamma, bn_beta)
    A_output, I_XZ = forward(A, eps)
    jax.block_until_ready((A_output, I_XZ))

    assert A_output.shape == (BATCH_SIZE, output_dim, nested_dim)
    assert I_XZ.shape == (BATCH_SIZE,)
    assert bool(jnp.all(jnp.isfinite(A_output)))
    assert bool(jnp.all(jnp.isfinite(I_XZ)))
    print("KERNEL_OK")
</pallas_src>

<mosaic_0001>
module attributes {stable_mosaic.version = 11 : i64} {
  func.func @_eib_kernel(%arg0: memref<2x256xf32, #tpu.memory_space<vmem>>, %arg1: memref<256x256xbf16, #tpu.memory_space<vmem>>, %arg2: memref<1x256xf32, #tpu.memory_space<vmem>>, %arg3: memref<1x256xf32, #tpu.memory_space<vmem>>, %arg4: memref<8x128xf32, #tpu.memory_space<vmem>>, %arg5: memref<2x128xf32, #tpu.memory_space<vmem>>, %arg6: memref<2x1xf32, #tpu.memory_space<vmem>>) attributes {dimension_semantics = [], scalar_prefetch = 0 : i64, scratch_operands = 0 : i64, tpu.core_type = #tpu.core_type<tc>} {
    %c0 = arith.constant 0 : index
    %c0_0 = arith.constant 0 : index
    %0 = vector.load %arg0[%c0, %c0_0] : memref<2x256xf32, #tpu.memory_space<vmem>>, vector<2x256xf32>
    %1 = arith.truncf %0 : vector<2x256xf32> to vector<2x256xbf16>
    %c0_1 = arith.constant 0 : index
    %c0_2 = arith.constant 0 : index
    %2 = vector.load %arg1[%c0_1, %c0_2] : memref<256x256xbf16, #tpu.memory_space<vmem>>, vector<256x256xbf16>
    %cst = arith.constant dense<0.000000e+00> : vector<2x256xf32>
    %3 = tpu.matmul %1, %2, %cst {dimension_numbers = #tpu.dot_dimension_numbers<[1], [0], [0], [1], [0, 0, 1, 1], [], []>} : vector<2x256xbf16>, vector<256x256xbf16>, vector<2x256xf32> -> vector<2x256xf32>
    %cst_3 = arith.constant 0.000000e+00 : f32
    %4 = vector.broadcast %cst_3 : f32 to vector<2x256xf32>
    %5 = arith.maximumf %3, %4 : vector<2x256xf32>
    %6 = tpu.iota {dimensions = array<i32: 0>} : vector<256x32xi32>
    %7 = tpu.iota {dimensions = array<i32: 1>} : vector<256x32xi32>
    %c8_i32 = arith.constant 8 : i32
    %8 = vector.broadcast %c8_i32 : i32 to vector<256x32xi32>
    %9 = arith.muli %7, %8 : vector<256x32xi32>
    %10 = arith.cmpi sge, %6, %9 : vector<256x32xi32>
    %c8_i32_4 = arith.constant 8 : i32
    %11 = vector.broadcast %c8_i32_4 : i32 to vector<256x32xi32>
    %12 = arith.addi %9, %11 : vector<256x32xi32>
    %13 = arith.cmpi slt, %6, %12 : vector<256x32xi32>
    %14 = arith.andi %10, %13 : vector<256x32xi1>
    %15 = arith.extui %14 : vector<256x32xi1> to vector<256x32xi32>
    %16 = arith.sitofp %15 : vector<256x32xi32> to vector<256x32xf32>
    %17 = tpu.iota {dimensions = array<i32: 0>} : vector<32x256xi32>
    %c8_i32_5 = arith.constant 8 : i32
    %18 = vector.broadcast %c8_i32_5 : i32 to vector<32x256xi32>
    %19 = arith.muli %17, %18 : vector<32x256xi32>
    %20 = tpu.iota {dimensions = array<i32: 1>} : vector<32x256xi32>
    %21 = arith.cmpi sge, %20, %19 : vector<32x256xi32>
    %c8_i32_6 = arith.constant 8 : i32
    %22 = vector.broadcast %c8_i32_6 : i32 to vector<32x256xi32>
    %23 = arith.addi %19, %22 : vector<32x256xi32>
    %24 = arith.cmpi slt, %20, %23 : vector<32x256xi32>
    %25 = arith.andi %21, %24 : vector<32x256xi1>
    %26 = arith.extui %25 : vector<32x256xi1> to vector<32x256xi32>
    %27 = arith.sitofp %26 : vector<32x256xi32> to vector<32x256xf32>
    %cst_7 = arith.constant dense<0.000000e+00> : vector<256xf32>
    %28 = vector.multi_reduction <add>, %5, %cst_7 [0] : vector<2x256xf32> to vector<256xf32>
    %29 = vector.shape_cast %28 : vector<256xf32> to vector<1x256xf32>
    %cst_8 = arith.constant dense<0.000000e+00> : vector<1x32xf32>
    %30 = tpu.matmul %29, %16, %cst_8 {dimension_numbers = #tpu.dot_dimension_numbers<[1], [0], [0], [1], [0, 0, 1, 1], [], []>} : vector<1x256xf32>, vector<256x32xf32>, vector<1x32xf32> -> vector<1x32xf32>
    %cst_9 = arith.constant 6.250000e-02 : f32
    %31 = vector.broadcast %cst_9 : f32 to vector<1x32xf32>
    %32 = arith.mulf %30, %31 : vector<1x32xf32>
    %cst_10 = arith.constant dense<0.000000e+00> : vector<1x256xf32>
    %33 = tpu.matmul %32, %27, %cst_10 {dimension_numbers = #tpu.dot_dimension_numbers<[1], [0], [0], [1], [0, 0, 1, 1], [], []>} : vector<1x32xf32>, vector<32x256xf32>, vector<1x256xf32> -> vector<1x256xf32>
    %34 = vector.broadcast %33 : vector<1x256xf32> to vector<2x256xf32>
    %35 = arith.subf %5, %34 : vector<2x256xf32>
    %36 = arith.mulf %35, %35 : vector<2x256xf32>
    %cst_11 = arith.constant dense<0.000000e+00> : vector<256xf32>
    %37 = vector.multi_reduction <add>, %36, %cst_11 [0] : vector<2x256xf32> to vector<256xf32>
    %38 = vector.shape_cast %37 : vector<256xf32> to vector<1x256xf32>
    %cst_12 = arith.constant dense<0.000000e+00> : vector<1x32xf32>
    %39 = tpu.matmul %38, %16, %cst_12 {dimension_numbers = #tpu.dot_dimension_numbers<[1], [0], [0], [1], [0, 0, 1, 1], [], []>} : vector<1x256xf32>, vector<256x32xf32>, vector<1x32xf32> -> vector<1x32xf32>
    %cst_13 = arith.constant 6.250000e-02 : f32
    %40 = vector.broadcast %cst_13 : f32 to vector<1x32xf32>
    %41 = arith.mulf %39, %40 : vector<1x32xf32>
    %cst_14 = arith.constant dense<0.000000e+00> : vector<1x256xf32>
    %42 = tpu.matmul %41, %27, %cst_14 {dimension_numbers = #tpu.dot_dimension_numbers<[1], [0], [0], [1], [0, 0, 1, 1], [], []>} : vector<1x32xf32>, vector<32x256xf32>, vector<1x256xf32> -> vector<1x256xf32>
    %c0_15 = arith.constant 0 : index
    %c0_16 = arith.constant 0 : index
    %43 = vector.load %arg2[%c0_15, %c0_16] : memref<1x256xf32, #tpu.memory_space<vmem>>, vector<1x256xf32>
    %cst_17 = arith.constant 9.99999974E-6 : f32
    %44 = vector.broadcast %cst_17 : f32 to vector<1x256xf32>
    %45 = arith.addf %42, %44 : vector<1x256xf32>
    %46 = math.rsqrt %45 : vector<1x256xf32>
    %47 = arith.mulf %43, %46 : vector<1x256xf32>
    %48 = vector.broadcast %47 : vector<1x256xf32> to vector<2x256xf32>
    %49 = arith.mulf %35, %48 : vector<2x256xf32>
    %c0_18 = arith.constant 0 : index
    %c0_19 = arith.constant 0 : index
    %50 = vector.load %arg3[%c0_18, %c0_19] : memref<1x256xf32, #tpu.memory_space<vmem>>, vector<1x256xf32>
    %51 = vector.broadcast %50 : vector<1x256xf32> to vector<2x256xf32>
    %52 = arith.addf %49, %51 : vector<2x256xf32>
    %53 = vector.extract_strided_slice %52 {offsets = [0, 0], sizes = [2, 128], strides = [1, 1]} : vector<2x256xf32> to vector<2x128xf32>
    %54 = vector.extract_strided_slice %52 {offsets = [0, 128], sizes = [2, 128], strides = [1, 1]} : vector<2x256xf32> to vector<2x128xf32>
    %cst_20 = arith.constant 0.000000e+00 : f32
    %55 = vector.broadcast %cst_20 : f32 to vector<2x128xf32>
    %56 = arith.maximumf %54, %55 : vector<2x128xf32>
    %57 = vector.broadcast %cst_20 : f32 to vector<2x128xf32>
    %58 = arith.subf %54, %57 : vector<2x128xf32>
    %59 = arith.cmpf one, %58, %58 : vector<2x128xf32>
    %60 = vector.broadcast %cst_20 : f32 to vector<2x128xf32>
    %61 = arith.addf %54, %60 : vector<2x128xf32>
    %62 = math.absf %58 : vector<2x128xf32>
    %cst_21 = arith.constant 0.000000e+00 : f32
    %63 = vector.broadcast %cst_21 : f32 to vector<2x128xf32>
    %64 = arith.subf %63, %62 : vector<2x128xf32>
    %65 = math.exp %64 : vector<2x128xf32>
    %66 = math.log1p %65 : vector<2x128xf32>
    %67 = arith.addf %56, %66 : vector<2x128xf32>
    %68 = arith.select %59, %61, %67 : vector<2x128xi1>, vector<2x128xf32>
    %cst_22 = arith.constant 1.000000e-10 : f32
    %69 = vector.broadcast %cst_22 : f32 to vector<2x128xf32>
    %70 = arith.addf %68, %69 : vector<2x128xf32>
    %c0_23 = arith.constant 0 : index
    %c0_24 = arith.constant 0 : index
    %71 = vector.load %arg4[%c0_23, %c0_24] : memref<8x128xf32, #tpu.memory_space<vmem>>, vector<2x128xf32>
    %72 = arith.mulf %71, %71 : vector<2x128xf32>
    %c2 = arith.constant 2 : index
    %c0_25 = arith.constant 0 : index
    %73 = vector.load %arg4[%c2, %c0_25] : memref<8x128xf32, #tpu.memory_space<vmem>>, vector<2x128xf32>
    %74 = arith.addf %71, %73 : vector<2x128xf32>
    %75 = arith.mulf %73, %73 : vector<2x128xf32>
    %76 = arith.addf %72, %75 : vector<2x128xf32>
    %c4 = arith.constant 4 : index
    %c0_26 = arith.constant 0 : index
    %77 = vector.load %arg4[%c4, %c0_26] : memref<8x128xf32, #tpu.memory_space<vmem>>, vector<2x128xf32>
    %78 = arith.addf %74, %77 : vector<2x128xf32>
    %79 = arith.mulf %77, %77 : vector<2x128xf32>
    %80 = arith.addf %76, %79 : vector<2x128xf32>
    %c6 = arith.constant 6 : index
    %c0_27 = arith.constant 0 : index
    %81 = vector.load %arg4[%c6, %c0_27] : memref<8x128xf32, #tpu.memory_space<vmem>>, vector<2x128xf32>
    %82 = arith.addf %78, %81 : vector<2x128xf32>
    %83 = arith.mulf %81, %81 : vector<2x128xf32>
    %84 = arith.addf %80, %83 : vector<2x128xf32>
    %cst_28 = arith.constant 2.500000e-01 : f32
    %85 = vector.broadcast %cst_28 : f32 to vector<2x128xf32>
    %86 = arith.mulf %82, %85 : vector<2x128xf32>
    %cst_29 = arith.constant 2.500000e-01 : f32
    %87 = vector.broadcast %cst_29 : f32 to vector<2x128xf32>
    %88 = arith.mulf %84, %87 : vector<2x128xf32>
    %89 = arith.mulf %70, %70 : vector<2x128xf32>
    %cst_30 = arith.constant 1.000000e+00 : f32
    %90 = vector.broadcast %cst_30 : f32 to vector<2x128xf32>
    %91 = arith.subf %89, %90 : vector<2x128xf32>
    %cst_31 = arith.constant 5.000000e-01 : f32
    %92 = vector.broadcast %cst_31 : f32 to vector<2x128xf32>
    %93 = arith.mulf %92, %91 : vector<2x128xf32>
    %94 = arith.mulf %93, %88 : vector<2x128xf32>
    %95 = arith.mulf %53, %70 : vector<2x128xf32>
    %96 = arith.mulf %95, %86 : vector<2x128xf32>
    %97 = arith.addf %94, %96 : vector<2x128xf32>
    %cst_32 = arith.constant 5.000000e-01 : f32
    %98 = vector.broadcast %cst_32 : f32 to vector<2x128xf32>
    %99 = arith.mulf %98, %53 : vector<2x128xf32>
    %100 = arith.mulf %99, %53 : vector<2x128xf32>
    %101 = math.log %70 : vector<2x128xf32>
    %102 = arith.subf %100, %101 : vector<2x128xf32>
    %103 = arith.addf %97, %102 : vector<2x128xf32>
    %c0_33 = arith.constant 0 : index
    %c0_34 = arith.constant 0 : index
    %104 = vector.load %arg5[%c0_33, %c0_34] : memref<2x128xf32, #tpu.memory_space<vmem>>, vector<2x128xf32>
    tpu.vector_store %arg5[%c0_33, %c0_34], %53 {strides = array<i32>} : memref<2x128xf32, #tpu.memory_space<vmem>>, vector<2x128xf32>,
    %cst_35 = arith.constant dense<0.000000e+00> : vector<2xf32>
    %105 = vector.multi_reduction <add>, %103, %cst_35 [1] : vector<2x128xf32> to vector<2xf32>
    %106 = vector.shape_cast %105 : vector<2xf32> to vector<2x1xf32>
    %c0_36 = arith.constant 0 : index
    %c0_37 = arith.constant 0 : index
    %107 = vector.load %arg6[%c0_36, %c0_37] : memref<2x1xf32, #tpu.memory_space<vmem>>, vector<2x1xf32>
    tpu.vector_store %arg6[%c0_36, %c0_37], %106 {strides = array<i32>} : memref<2x1xf32, #tpu.memory_space<vmem>>, vector<2x1xf32>,
    return
  }
}

</mosaic_0001>

<llo_original>
// kernel: forward.1
$region0: #{forward.1}
  #allocation0 [shape = 'u32[]', space=smem, size = 0x4, offset = 0x4, fixed_abs, tag = 'smem constant byte address 0x4 - core index']
  #allocation1 [shape = 'u32[72,128]{1,0:T(1,128)}', space=vmem, size = 0x9000, scoped, tag = 'internal scratch']
  %s0 = inlined_call_operand.vmem [shape: f32[2,256], index: 0, kind: input, shape index: {}]
  %s1 = inlined_call_operand.vmem [shape: bf16[256,256], index: 1, kind: input, shape index: {}]
  %s2 = inlined_call_operand.vmem [shape: f32[1,256], index: 2, kind: input, shape index: {}]
  %s3 = inlined_call_operand.vmem [shape: f32[1,256], index: 3, kind: input, shape index: {}]
  %s4 = inlined_call_operand.vmem [shape: f32[8,128], index: 4, kind: input, shape index: {}]
  %s5 = inlined_call_operand.vmem [shape: f32[2,128], index: 5, kind: output, shape index: {0}]
  %s6 = inlined_call_operand.vmem [shape: f32[2,1], index: 6, kind: output, shape index: {1}]
  %7 = xla_tuple %s5, %s6
  %s8 = sld [smem:[#allocation0]]
  $region38: #{forward.1} parent=0
    _
  %s10 = ssub.s32 1, %s8
  %s11 = scalar_select 0, %s10, %s8
  // Predicated region
  $region2: #{forward.1} parent=0 // pred_check
    _
  $region3: #{forward.1} parent=0 // pred_check_branch
    %13 = sbr.rel (0) target = $region5
  $region4: #{forward.1} parent=0 // pred_region
    _
  $region5: #{forward.1} parent=0 // pred_fallthru
    _
  // Predicated region
  $region6: #{forward.1} parent=0 // pred_check
    _
  $region7: #{forward.1} parent=0 // pred_check_branch
    %15 = sbr.rel (0) target = $region9
  $region8: #{forward.1} parent=0 // pred_region
    _
  $region9: #{forward.1} parent=0 // pred_fallthru
    _
  // Predicated region
  $region10: #{forward.1} parent=0 // pred_check
    _
  $region11: #{forward.1} parent=0 // pred_check_branch
    %17 = sbr.rel (0) target = $region13
  $region12: #{forward.1} parent=0 // pred_region
    _
  $region13: #{forward.1} parent=0 // pred_fallthru
    _
  // Predicated region
  $region14: #{forward.1} parent=0 // pred_check
    _
  $region15: #{forward.1} parent=0 // pred_check_branch
    %19 = sbr.rel (0) target = $region17
  $region16: #{forward.1} parent=0 // pred_region
    _
  $region17: #{forward.1} parent=0 // pred_fallthru
    _
  // Predicated region
  $region18: #{forward.1} parent=0 // pred_check
    _
  $region19: #{forward.1} parent=0 // pred_check_branch
    %21 = sbr.rel (0) target = $region21
  $region20: #{forward.1} parent=0 // pred_region
    _
  $region21: #{forward.1} parent=0 // pred_fallthru
    _
  %v22 = vld [vmem:[%s0] sm:$0xf]
  %24 = vst [vmem:[#allocation1] ss:$4 sm:$0xff] %v22
  %v25 = vld.sshfl [vmem:[#allocation1] sm:$0xff pattern:$0x73625140]
  %v26 = vld.sshfl [vmem:[#allocation1 + $0x8] sm:$0xff pattern:$0x73625140]
  %v29 = vpack.c.bf16 %v25, %v25
  %v30 = vpack.c.bf16 %v26, %v26
  %v31 = vld [vmem:[%s1] sm:$0xff]
  %v32 = vld [vmem:[%s1 + $0x8] sm:$0xff]
  %v33 = vld [vmem:[%s1 + $0x10] sm:$0xff]
  %v34 = vld [vmem:[%s1 + $0x18] sm:$0xff]
  %v35 = vld [vmem:[%s1 + $0x20] sm:$0xff]
  %v36 = vld [vmem:[%s1 + $0x28] sm:$0xff]
  %v37 = vld [vmem:[%s1 + $0x30] sm:$0xff]
  %v38 = vld [vmem:[%s1 + $0x38] sm:$0xff]
  %v39 = vld [vmem:[%s1 + $0x40] sm:$0xff]
  %v40 = vld [vmem:[%s1 + $0x48] sm:$0xff]
  %v41 = vld [vmem:[%s1 + $0x50] sm:$0xff]
  %v42 = vld [vmem:[%s1 + $0x58] sm:$0xff]
  %v43 = vld [vmem:[%s1 + $0x60] sm:$0xff]
  %v44 = vld [vmem:[%s1 + $0x68] sm:$0xff]
  %v45 = vld [vmem:[%s1 + $0x70] sm:$0xff]
  %v46 = vld [vmem:[%s1 + $0x78] sm:$0xff]
  %v47 = vld [vmem:[%s1 + $0x80] sm:$0xff]
  %v48 = vld [vmem:[%s1 + $0x88] sm:$0xff]
  %v49 = vld [vmem:[%s1 + $0x90] sm:$0xff]
  %v50 = vld [vmem:[%s1 + $0x98] sm:$0xff]
  %v51 = vld [vmem:[%s1 + $0xa0] sm:$0xff]
  %v52 = vld [vmem:[%s1 + $0xa8] sm:$0xff]
  %v53 = vld [vmem:[%s1 + $0xb0] sm:$0xff]
  %v54 = vld [vmem:[%s1 + $0xb8] sm:$0xff]
  %v55 = vld [vmem:[%s1 + $0xc0] sm:$0xff]
  %v56 = vld [vmem:[%s1 + $0xc8] sm:$0xff]
  %v57 = vld [vmem:[%s1 + $0xd0] sm:$0xff]
  %v58 = vld [vmem:[%s1 + $0xd8] sm:$0xff]
  %v59 = vld [vmem:[%s1 + $0xe0] sm:$0xff]
  %v60 = vld [vmem:[%s1 + $0xe8] sm:$0xff]
  %v61 = vld [vmem:[%s1 + $0xf0] sm:$0xff]
  %v62 = vld [vmem:[%s1 + $0xf8] sm:$0xff]
  %v95 = vunpack.c.l.b16 %v31
  %v96 = vunpack.c.h.b16 %v31
  %v97 = vunpack.c.l.b16 %v32
  %v98 = vunpack.c.h.b16 %v32
  %v99 = vunpack.c.l.b16 %v33
  %v100 = vunpack.c.h.b16 %v33
  %v101 = vunpack.c.l.b16 %v34
  %v102 = vunpack.c.h.b16 %v34
  %v103 = vunpack.c.l.b16 %v35
  %v104 = vunpack.c.h.b16 %v35
  %v105 = vunpack.c.l.b16 %v36
  %v106 = vunpack.c.h.b16 %v36
  %v107 = vunpack.c.l.b16 %v37
  %v108 = vunpack.c.h.b16 %v37
  %v109 = vunpack.c.l.b16 %v38
  %v110 = vunpack.c.h.b16 %v38
  %v111 = vunpack.c.l.b16 %v39
  %v112 = vunpack.c.h.b16 %v39
  %v113 = vunpack.c.l.b16 %v40
  %v114 = vunpack.c.h.b16 %v40
  %v115 = vunpack.c.l.b16 %v41
  %v116 = vunpack.c.h.b16 %v41
  %v117 = vunpack.c.l.b16 %v42
  %v118 = vunpack.c.h.b16 %v42
  %v119 = vunpack.c.l.b16 %v43
  %v120 = vunpack.c.h.b16 %v43
  %v121 = vunpack.c.l.b16 %v44
  %v122 = vunpack.c.h.b16 %v44
  %v123 = vunpack.c.l.b16 %v45
  %v124 = vunpack.c.h.b16 %v45
  %v125 = vunpack.c.l.b16 %v46
  %v126 = vunpack.c.h.b16 %v46
  %v127 = vunpack.c.l.b16 %v47
  %v128 = vunpack.c.h.b16 %v47
  %v129 = vunpack.c.l.b16 %v48
  %v130 = vunpack.c.h.b16 %v48
  %v131 = vunpack.c.l.b16 %v49
  %v132 = vunpack.c.h.b16 %v49
  %v133 = vunpack.c.l.b16 %v50
  %v134 = vunpack.c.h.b16 %v50
  %v135 = vunpack.c.l.b16 %v51
  %v136 = vunpack.c.h.b16 %v51
  %v137 = vunpack.c.l.b16 %v52
  %v138 = vunpack.c.h.b16 %v52
  %v139 = vunpack.c.l.b16 %v53
  %v140 = vunpack.c.h.b16 %v53
  %v141 = vunpack.c.l.b16 %v54
  %v142 = vunpack.c.h.b16 %v54
  %v143 = vunpack.c.l.b16 %v55
  %v144 = vunpack.c.h.b16 %v55
  %v145 = vunpack.c.l.b16 %v56
  %v146 = vunpack.c.h.b16 %v56
  %v147 = vunpack.c.l.b16 %v57
  %v148 = vunpack.c.h.b16 %v57
  %v149 = vunpack.c.l.b16 %v58
  %v150 = vunpack.c.h.b16 %v58
  %v151 = vunpack.c.l.b16 %v59
  %v152 = vunpack.c.h.b16 %v59
  %v153 = vunpack.c.l.b16 %v60
  %v154 = vunpack.c.h.b16 %v60
  %v155 = vunpack.c.l.b16 %v61
  %v156 = vunpack.c.h.b16 %v61
  %v157 = vunpack.c.l.b16 %v62
  %v158 = vunpack.c.h.b16 %v62
  %v159 = vpack.c.b16 %v97, %v95
  %v160 = vpack.c.b16 %v98, %v96
  %v161 = vpack.c.b16 %v101, %v99
  %v162 = vpack.c.b16 %v102, %v100
  %v163 = vpack.c.b16 %v105, %v103
  %v164 = vpack.c.b16 %v106, %v104
  %v165 = vpack.c.b16 %v109, %v107
  %v166 = vpack.c.b16 %v110, %v108
  %v167 = vpack.c.b16 %v113, %v111
  %v168 = vpack.c.b16 %v114, %v112
  %v169 = vpack.c.b16 %v117, %v115
  %v170 = vpack.c.b16 %v118, %v116
  %v171 = vpack.c.b16 %v121, %v119
  %v172 = vpack.c.b16 %v122, %v120
  %v173 = vpack.c.b16 %v125, %v123
  %v174 = vpack.c.b16 %v126, %v124
  %v175 = vpack.c.b16 %v129, %v127
  %v176 = vpack.c.b16 %v130, %v128
  %v177 = vpack.c.b16 %v133, %v131
  %v178 = vpack.c.b16 %v134, %v132
  %v179 = vpack.c.b16 %v137, %v135
  %v180 = vpack.c.b16 %v138, %v136
  %v181 = vpack.c.b16 %v141, %v139
  %v182 = vpack.c.b16 %v142, %v140
  %v183 = vpack.c.b16 %v145, %v143
  %v184 = vpack.c.b16 %v146, %v144
  %v185 = vpack.c.b16 %v149, %v147
  %v186 = vpack.c.b16 %v150, %v148
  %v187 = vpack.c.b16 %v153, %v151
  %v188 = vpack.c.b16 %v154, %v152
  %v189 = vpack.c.b16 %v157, %v155
  %v190 = vpack.c.b16 %v158, %v156
  %223 = vmatpush.bf16.msra.mxu0 %v173
  %224 = vmatpush.bf16.msra.mxu0 %v171
  %225 = vmatpush.bf16.msra.mxu0 %v169
  %226 = vmatpush.bf16.msra.mxu0 %v167
  %227 = vmatpush.bf16.msra.mxu0 %v165
  %228 = vmatpush.bf16.msra.mxu0 %v163
  %229 = vmatpush.bf16.msra.mxu0 %v161
  %230 = vmatpush.bf16.msra.mxu0 %v159
  %231 = vmatmul.bf16.gmra.mxu0 %v29
  %v232 = vpop.f32.mrf.mxu0
  %v233 = vadd.f32 0.0, %v232
  %v234 = vpop.f32.mrf.mxu0
  %235 = vdwg.mxu0
  %236 = vmatpush.bf16.msra.mxu0 %v189
  %237 = vmatpush.bf16.msra.mxu0 %v187
  %238 = vmatpush.bf16.msra.mxu0 %v185
  %239 = vmatpush.bf16.msra.mxu0 %v183
  %240 = vmatpush.bf16.msra.mxu0 %v181
  %241 = vmatpush.bf16.msra.mxu0 %v179
  %242 = vmatpush.bf16.msra.mxu0 %v177
  %243 = vmatpush.bf16.msra.mxu0 %v175
  %244 = vmatmul.bf16.gmra.mxu0 %v30
  %v245 = vpop.f32.mrf.mxu0
  %v246 = vadd.f32 %v233, %v245
  %v247 = vpop.f32.mrf.mxu0
  %248 = vdwg.mxu0
  %249 = vmatpush.bf16.msra.mxu0 %v174
  %250 = vmatpush.bf16.msra.mxu0 %v172
  %251 = vmatpush.bf16.msra.mxu0 %v170
  %252 = vmatpush.bf16.msra.mxu0 %v168
  %253 = vmatpush.bf16.msra.mxu0 %v166
  %254 = vmatpush.bf16.msra.mxu0 %v164
  %255 = vmatpush.bf16.msra.mxu0 %v162
  %256 = vmatpush.bf16.msra.mxu0 %v160
  %257 = vmatmul.bf16.gmra.mxu0 %v29
  %v258 = vpop.f32.mrf.mxu0
  %v259 = vadd.f32 0.0, %v258
  %v260 = vpop.f32.mrf.mxu0
  %261 = vdwg.mxu0
  %262 = vmatpush.bf16.msra.mxu0 %v190
  %263 = vmatpush.bf16.msra.mxu0 %v188
  %264 = vmatpush.bf16.msra.mxu0 %v186
  %265 = vmatpush.bf16.msra.mxu0 %v184
  %266 = vmatpush.bf16.msra.mxu0 %v182
  %267 = vmatpush.bf16.msra.mxu0 %v180
  %268 = vmatpush.bf16.msra.mxu0 %v178
  %269 = vmatpush.bf16.msra.mxu0 %v176
  %270 = vmatmul.bf16.gmra.mxu0 %v30
  %v271 = vpop.f32.mrf.mxu0
  %v272 = vadd.f32 %v259, %v271
  %v273 = vpop.f32.mrf.mxu0
  %274 = vdwg.mxu0
  %v275 = vmax.f32 %v246, 0.0
  %v276 = vmax.f32 %v272, 0.0
  %v277 = vlaneseq
  %v278 = vshrl.u32 %v277, 7
  %v279 = vadd.s32 %v278, 8
  %v280 = vadd.s32 %v278, 16
  %v281 = vadd.s32 %v278, 24
  %v282 = vadd.s32 %v278, 32
  %v283 = vadd.s32 %v278, 40
  %v284 = vadd.s32 %v278, 48
  %v285 = vadd.s32 %v278, 56
  %v286 = vadd.s32 %v278, 64
  %v287 = vadd.s32 %v278, 72
  %v288 = vadd.s32 %v278, 80
  %v289 = vadd.s32 %v278, 88
  %v290 = vadd.s32 %v278, 96
  %v291 = vadd.s32 %v278, 104
  %v292 = vadd.s32 %v278, 112
  %v293 = vadd.s32 %v278, 120
  %v294 = vadd.s32 %v278, 128
  %v295 = vadd.s32 %v278, 136
  %v296 = vadd.s32 %v278, 144
  %v297 = vadd.s32 %v278, 152
  %v298 = vadd.s32 %v278, 160
  %v299 = vadd.s32 %v278, 168
  %v300 = vadd.s32 %v278, 176
  %v301 = vadd.s32 %v278, 184
  %v302 = vadd.s32 %v278, 192
  %v303 = vadd.s32 %v278, 200
  %v304 = vadd.s32 %v278, 208
  %v305 = vadd.s32 %v278, 216
  %v306 = vadd.s32 %v278, 224
  %v307 = vadd.s32 %v278, 232
  %v308 = vadd.s32 %v278, 240
  %v309 = vadd.s32 %v278, 248
  %v310 = vlaneseq
  %v311 = vand.u32 %v310, 127
  %v312 = vmul.u32 %v311, 8
  %vm313 = vcmp.ge.s32.totalorder %v278, %v312
  %vm314 = vcmp.ge.s32.totalorder %v279, %v312
  %vm315 = vcmp.ge.s32.totalorder %v280, %v312
  %vm316 = vcmp.ge.s32.totalorder %v281, %v312
  %vm317 = vcmp.ge.s32.totalorder %v282, %v312
  %vm318 = vcmp.ge.s32.totalorder %v283, %v312
  %vm319 = vcmp.ge.s32.totalorder %v284, %v312
  %vm320 = vcmp.ge.s32.totalorder %v285, %v312
  %vm321 = vcmp.ge.s32.totalorder %v286, %v312
  %vm322 = vcmp.ge.s32.totalorder %v287, %v312
  %vm323 = vcmp.ge.s32.totalorder %v288, %v312
  %vm324 = vcmp.ge.s32.totalorder %v289, %v312
  %vm325 = vcmp.ge.s32.totalorder %v290, %v312
  %vm326 = vcmp.ge.s32.totalorder %v291, %v312
  %vm327 = vcmp.ge.s32.totalorder %v292, %v312
  %vm328 = vcmp.ge.s32.totalorder %v293, %v312
  %vm329 = vcmp.ge.s32.totalorder %v294, %v312
  %vm330 = vcmp.ge.s32.totalorder %v295, %v312
  %vm331 = vcmp.ge.s32.totalorder %v296, %v312
  %vm332 = vcmp.ge.s32.totalorder %v297, %v312
  %vm333 = vcmp.ge.s32.totalorder %v298, %v312
  %vm334 = vcmp.ge.s32.totalorder %v299, %v312
  %vm335 = vcmp.ge.s32.totalorder %v300, %v312
  %vm336 = vcmp.ge.s32.totalorder %v301, %v312
  %vm337 = vcmp.ge.s32.totalorder %v302, %v312
  %vm338 = vcmp.ge.s32.totalorder %v303, %v312
  %vm339 = vcmp.ge.s32.totalorder %v304, %v312
  %vm340 = vcmp.ge.s32.totalorder %v305, %v312
  %vm341 = vcmp.ge.s32.totalorder %v306, %v312
  %vm342 = vcmp.ge.s32.totalorder %v307, %v312
  %vm343 = vcmp.ge.s32.totalorder %v308, %v312
  %vm344 = vcmp.ge.s32.totalorder %v309, %v312
  %v345 = vadd.s32 %v312, 8
  %vm346 = vcmp.lt.s32.totalorder %v278, %v345
  %vm347 = vcmp.lt.s32.totalorder %v279, %v345
  %vm348 = vcmp.lt.s32.totalorder %v280, %v345
  %vm349 = vcmp.lt.s32.totalorder %v281, %v345
  %vm350 = vcmp.lt.s32.totalorder %v282, %v345
  %vm351 = vcmp.lt.s32.totalorder %v283, %v345
  %vm352 = vcmp.lt.s32.totalorder %v284, %v345
  %vm353 = vcmp.lt.s32.totalorder %v285, %v345
  %vm354 = vcmp.lt.s32.totalorder %v286, %v345
  %vm355 = vcmp.lt.s32.totalorder %v287, %v345
  %vm356 = vcmp.lt.s32.totalorder %v288, %v345
  %vm357 = vcmp.lt.s32.totalorder %v289, %v345
  %vm358 = vcmp.lt.s32.totalorder %v290, %v345
  %vm359 = vcmp.lt.s32.totalorder %v291, %v345
  %vm360 = vcmp.lt.s32.totalorder %v292, %v345
  %vm361 = vcmp.lt.s32.totalorder %v293, %v345
  %vm362 = vcmp.lt.s32.totalorder %v294, %v345
  %vm363 = vcmp.lt.s32.totalorder %v295, %v345
  %vm364 = vcmp.lt.s32.totalorder %v296, %v345
  %vm365 = vcmp.lt.s32.totalorder %v297, %v345
  %vm366 = vcmp.lt.s32.totalorder %v298, %v345
  %vm367 = vcmp.lt.s32.totalorder %v299, %v345
  %vm368 = vcmp.lt.s32.totalorder %v300, %v345
  %vm369 = vcmp.lt.s32.totalorder %v301, %v345
  %vm370 = vcmp.lt.s32.totalorder %v302, %v345
  %vm371 = vcmp.lt.s32.totalorder %v303, %v345
  %vm372 = vcmp.lt.s32.totalorder %v304, %v345
  %vm373 = vcmp.lt.s32.totalorder %v305, %v345
  %vm374 = vcmp.lt.s32.totalorder %v306, %v345
  %vm375 = vcmp.lt.s32.totalorder %v307, %v345
  %vm376 = vcmp.lt.s32.totalorder %v308, %v345
  %vm377 = vcmp.lt.s32.totalorder %v309, %v345
  %vm378 = vmand %vm313, %vm346
  %vm379 = vmand %vm314, %vm347
  %vm380 = vmand %vm315, %vm348
  %vm381 = vmand %vm316, %vm349
  %vm382 = vmand %vm317, %vm350
  %vm383 = vmand %vm318, %vm351
  %vm384 = vmand %vm319, %vm352
  %vm385 = vmand %vm320, %vm353
  %vm386 = vmand %vm321, %vm354
  %vm387 = vmand %vm322, %vm355
  %vm388 = vmand %vm323, %vm356
  %vm389 = vmand %vm324, %vm357
  %vm390 = vmand %vm325, %vm358
  %vm391 = vmand %vm326, %vm359
  %vm392 = vmand %vm327, %vm360
  %vm393 = vmand %vm328, %vm361
  %vm394 = vmand %vm329, %vm362
  %vm395 = vmand %vm330, %vm363
  %vm396 = vmand %vm331, %vm364
  %vm397 = vmand %vm332, %vm365
  %vm398 = vmand %vm333, %vm366
  %vm399 = vmand %vm334, %vm367
  %vm400 = vmand %vm335, %vm368
  %vm401 = vmand %vm336, %vm369
  %vm402 = vmand %vm337, %vm370
  %vm403 = vmand %vm338, %vm371
  %vm404 = vmand %vm339, %vm372
  %vm405 = vmand %vm340, %vm373
  %vm406 = vmand %vm341, %vm374
  %vm407 = vmand %vm342, %vm375
  %vm408 = vmand %vm343, %vm376
  %vm409 = vmand %vm344, %vm377
  %v410 = vsel %vm378, 1, 0
  %v411 = vsel %vm379, 1, 0
  %v412 = vsel %vm380, 1, 0
  %v413 = vsel %vm381, 1, 0
  %v414 = vsel %vm382, 1, 0
  %v415 = vsel %vm383, 1, 0
  %v416 = vsel %vm384, 1, 0
  %v417 = vsel %vm385, 1, 0
  %v418 = vsel %vm386, 1, 0
  %v419 = vsel %vm387, 1, 0
  %v420 = vsel %vm388, 1, 0
  %v421 = vsel %vm389, 1, 0
  %v422 = vsel %vm390, 1, 0
  %v423 = vsel %vm391, 1, 0
  %v424 = vsel %vm392, 1, 0
  %v425 = vsel %vm393, 1, 0
  %v426 = vsel %vm394, 1, 0
  %v427 = vsel %vm395, 1, 0
  %v428 = vsel %vm396, 1, 0
  %v429 = vsel %vm397, 1, 0
  %v430 = vsel %vm398, 1, 0
  %v431 = vsel %vm399, 1, 0
  %v432 = vsel %vm400, 1, 0
  %v433 = vsel %vm401, 1, 0
  %v434 = vsel %vm402, 1, 0
  %v435 = vsel %vm403, 1, 0
  %v436 = vsel %vm404, 1, 0
  %v437 = vsel %vm405, 1, 0
  %v438 = vsel %vm406, 1, 0
  %v439 = vsel %vm407, 1, 0
  %v440 = vsel %vm408, 1, 0
  %v441 = vsel %vm409, 1, 0
  %v442 = vcvt.s32.f32 %v410
  %v443 = vcvt.s32.f32 %v411
  %v444 = vcvt.s32.f32 %v412
  %v445 = vcvt.s32.f32 %v413
  %v446 = vcvt.s32.f32 %v414
  %v447 = vcvt.s32.f32 %v415
  %v448 = vcvt.s32.f32 %v416
  %v449 = vcvt.s32.f32 %v417
  %v450 = vcvt.s32.f32 %v418
  %v451 = vcvt.s32.f32 %v419
  %v452 = vcvt.s32.f32 %v420
  %v453 = vcvt.s32.f32 %v421
  %v454 = vcvt.s32.f32 %v422
  %v455 = vcvt.s32.f32 %v423
  %v456 = vcvt.s32.f32 %v424
  %v457 = vcvt.s32.f32 %v425
  %v458 = vcvt.s32.f32 %v426
  %v459 = vcvt.s32.f32 %v427
  %v460 = vcvt.s32.f32 %v428
  %v461 = vcvt.s32.f32 %v429
  %v462 = vcvt.s32.f32 %v430
  %v463 = vcvt.s32.f32 %v431
  %v464 = vcvt.s32.f32 %v432
  %v465 = vcvt.s32.f32 %v433
  %v466 = vcvt.s32.f32 %v434
  %v467 = vcvt.s32.f32 %v435
  %v468 = vcvt.s32.f32 %v436
  %v469 = vcvt.s32.f32 %v437
  %v470 = vcvt.s32.f32 %v438
  %v471 = vcvt.s32.f32 %v439
  %v472 = vcvt.s32.f32 %v440
  %v473 = vcvt.s32.f32 %v441
  %v474 = vmul.u32 %v278, 8
  %v475 = vmul.u32 %v279, 8
  %v476 = vmul.u32 %v280, 8
  %v477 = vmul.u32 %v281, 8
  %v478 = vadd.s32 %v311, 128
  %vm479 = vcmp.ge.s32.totalorder %v311, %v474
  %vm480 = vcmp.ge.s32.totalorder %v478, %v474
  %vm481 = vcmp.ge.s32.totalorder %v311, %v475
  %vm482 = vcmp.ge.s32.totalorder %v478, %v475
  %vm483 = vcmp.ge.s32.totalorder %v311, %v476
  %vm484 = vcmp.ge.s32.totalorder %v478, %v476
  %vm485 = vcmp.ge.s32.totalorder %v311, %v477
  %vm486 = vcmp.ge.s32.totalorder %v478, %v477
  %v487 = vadd.s32 %v474, 8
  %v488 = vadd.s32 %v475, 8
  %v489 = vadd.s32 %v476, 8
  %v490 = vadd.s32 %v477, 8
  %vm491 = vcmp.lt.s32.totalorder %v311, %v487
  %vm492 = vcmp.lt.s32.totalorder %v478, %v487
  %vm493 = vcmp.lt.s32.totalorder %v311, %v488
  %vm494 = vcmp.lt.s32.totalorder %v478, %v488
  %vm495 = vcmp.lt.s32.totalorder %v311, %v489
  %vm496 = vcmp.lt.s32.totalorder %v478, %v489
  %vm497 = vcmp.lt.s32.totalorder %v311, %v490
  %vm498 = vcmp.lt.s32.totalorder %v478, %v490
  %vm499 = vmand %vm479, %vm491
  %vm500 = vmand %vm480, %vm492
  %vm501 = vmand %vm481, %vm493
  %vm502 = vmand %vm482, %vm494
  %vm503 = vmand %vm483, %vm495
  %vm504 = vmand %vm484, %vm496
  %vm505 = vmand %vm485, %vm497
  %vm506 = vmand %vm486, %vm498
  %v507 = vsel %vm499, 1, 0
  %v508 = vsel %vm500, 1, 0
  %v509 = vsel %vm501, 1, 0
  %v510 = vsel %vm502, 1, 0
  %v511 = vsel %vm503, 1, 0
  %v512 = vsel %vm504, 1, 0
  %v513 = vsel %vm505, 1, 0
  %v514 = vsel %vm506, 1, 0
  %v515 = vcvt.s32.f32 %v507
  %v516 = vcvt.s32.f32 %v508
  %v517 = vcvt.s32.f32 %v509
  %v518 = vcvt.s32.f32 %v510
  %v519 = vcvt.s32.f32 %v511
  %v520 = vcvt.s32.f32 %v512
  %v521 = vcvt.s32.f32 %v513
  %v522 = vcvt.s32.f32 %v514
  %vm523 = vcmask 1041408
  %v524 = vsel %vm523, %v275, 0.0
  %v525 = vrot.slane %v524, 4
  %v526 = vadd.f32 %v524, %v525
  %v527 = vrot.slane %v526, 2
  %v528 = vadd.f32 %v526, %v527
  %v529 = vrot.slane %v528, 1
  %v530 = vadd.f32 %v528, %v529
  %v531 = vsel %vm523, %v276, 0.0
  %v532 = vrot.slane %v531, 4
  %v533 = vadd.f32 %v531, %v532
  %v534 = vrot.slane %v533, 2
  %v535 = vadd.f32 %v533, %v534
  %v536 = vrot.slane %v535, 1
  %v537 = vadd.f32 %v535, %v536
  %538 = vmatpush.msra.mxu0 %v457
  %539 = vmatpush.msra.mxu0 %v456
  %540 = vmatpush.msra.mxu0 %v455
  %541 = vmatpush.msra.mxu0 %v454
  %542 = vmatpush.msra.mxu0 %v453
  %543 = vmatpush.msra.mxu0 %v452
  %544 = vmatpush.msra.mxu0 %v451
  %545 = vmatpush.msra.mxu0 %v450
  %546 = vmatpush.msra.mxu0 %v449
  %547 = vmatpush.msra.mxu0 %v448
  %548 = vmatpush.msra.mxu0 %v447
  %549 = vmatpush.msra.mxu0 %v446
  %550 = vmatpush.msra.mxu0 %v445
  %551 = vmatpush.msra.mxu0 %v444
  %552 = vmatpush.msra.mxu0 %v443
  %553 = vmatpush.msra.mxu0 %v442
  %554 = vmatmul.f32.gmra.mxu0 %v530
  %v555 = vpop.f32.mrf.mxu0
  %v556 = vadd.f32 0.0, %v555
  %557 = vdwg.mxu0
  %558 = vmatpush.msra.mxu0 %v473
  %559 = vmatpush.msra.mxu0 %v472
  %560 = vmatpush.msra.mxu0 %v471
  %561 = vmatpush.msra.mxu0 %v470
  %562 = vmatpush.msra.mxu0 %v469
  %563 = vmatpush.msra.mxu0 %v468
  %564 = vmatpush.msra.mxu0 %v467
  %565 = vmatpush.msra.mxu0 %v466
  %566 = vmatpush.msra.mxu0 %v465
  %567 = vmatpush.msra.mxu0 %v464
  %568 = vmatpush.msra.mxu0 %v463
  %569 = vmatpush.msra.mxu0 %v462
  %570 = vmatpush.msra.mxu0 %v461
  %571 = vmatpush.msra.mxu0 %v460
  %572 = vmatpush.msra.mxu0 %v459
  %573 = vmatpush.msra.mxu0 %v458
  %574 = vmatmul.f32.gmra.mxu0 %v537
  %v575 = vpop.f32.mrf.mxu0
  %v576 = vadd.f32 %v556, %v575
  %577 = vdwg.mxu0
  %v578 = vmul.f32 %v576, 0.0625
  %vm579 = vcmask 261120
  %v581 = vsel %vm579, %v578, 0
  %583 = vmatpush.msra.mxu0 0.0
  %584 = vmatpush.msra.mxu0 0.0
  %585 = vmatpush.msra.mxu0 0.0
  %586 = vmatpush.msra.mxu0 0.0
  %587 = vmatpush.msra.mxu0 0.0
  %588 = vmatpush.msra.mxu0 0.0
  %589 = vmatpush.msra.mxu0 0.0
  %590 = vmatpush.msra.mxu0 0.0
  %591 = vmatpush.msra.mxu0 0.0
  %592 = vmatpush.msra.mxu0 0.0
  %593 = vmatpush.msra.mxu0 0.0
  %594 = vmatpush.msra.mxu0 0.0
  %595 = vmatpush.msra.mxu0 %v521
  %596 = vmatpush.msra.mxu0 %v519
  %597 = vmatpush.msra.mxu0 %v517
  %598 = vmatpush.msra.mxu0 %v515
  %599 = vmatmul.f32.gmra.mxu0 %v581
  %v600 = vpop.f32.mrf.mxu0
  %v601 = vadd.f32 0.0, %v600
  %602 = vdwg.mxu0
  %603 = vmatpush.msra.mxu0 0.0
  %604 = vmatpush.msra.mxu0 0.0
  %605 = vmatpush.msra.mxu0 0.0
  %606 = vmatpush.msra.mxu0 0.0
  %607 = vmatpush.msra.mxu0 0.0
  %608 = vmatpush.msra.mxu0 0.0
  %609 = vmatpush.msra.mxu0 0.0
  %610 = vmatpush.msra.mxu0 0.0
  %611 = vmatpush.msra.mxu0 0.0
  %612 = vmatpush.msra.mxu0 0.0
  %613 = vmatpush.msra.mxu0 0.0
  %614 = vmatpush.msra.mxu0 0.0
  %615 = vmatpush.msra.mxu0 %v522
  %616 = vmatpush.msra.mxu0 %v520
  %617 = vmatpush.msra.mxu0 %v518
  %618 = vmatpush.msra.mxu0 %v516
  %619 = vmatmul.f32.gmra.mxu0 %v581
  %v620 = vpop.f32.mrf.mxu0
  %v621 = vadd.f32 0.0, %v620
  %622 = vdwg.mxu0
  %v623 = vperm.slane %v601, 0
  %v624 = vperm.slane %v621, 0
  %v625 = vsub.f32 %v275, %v623
  %v626 = vsub.f32 %v276, %v624
  %v627 = vmul.f32 %v625, %v625
  %v628 = vmul.f32 %v626, %v626
  %v629 = vsel %vm523, %v627, 0.0
  %v630 = vrot.slane %v629, 4
  %v631 = vadd.f32 %v629, %v630
  %v632 = vrot.slane %v631, 2
  %v633 = vadd.f32 %v631, %v632
  %v634 = vrot.slane %v633, 1
  %v635 = vadd.f32 %v633, %v634
  %v636 = vsel %vm523, %v628, 0.0
  %v637 = vrot.slane %v636, 4
  %v638 = vadd.f32 %v636, %v637
  %v639 = vrot.slane %v638, 2
  %v640 = vadd.f32 %v638, %v639
  %v641 = vrot.slane %v640, 1
  %v642 = vadd.f32 %v640, %v641
  %643 = vmatpush.msra.mxu0 %v457
  %644 = vmatpush.msra.mxu0 %v456
  %645 = vmatpush.msra.mxu0 %v455
  %646 = vmatpush.msra.mxu0 %v454
  %647 = vmatpush.msra.mxu0 %v453
  %648 = vmatpush.msra.mxu0 %v452
  %649 = vmatpush.msra.mxu0 %v451
  %650 = vmatpush.msra.mxu0 %v450
  %651 = vmatpush.msra.mxu0 %v449
  %652 = vmatpush.msra.mxu0 %v448
  %653 = vmatpush.msra.mxu0 %v447
  %654 = vmatpush.msra.mxu0 %v446
  %655 = vmatpush.msra.mxu0 %v445
  %656 = vmatpush.msra.mxu0 %v444
  %657 = vmatpush.msra.mxu0 %v443
  %658 = vmatpush.msra.mxu0 %v442
  %659 = vmatmul.f32.gmra.mxu0 %v635
  %v660 = vpop.f32.mrf.mxu0
  %v661 = vadd.f32 0.0, %v660
  %662 = vdwg.mxu0
  %663 = vmatpush.msra.mxu0 %v473
  %664 = vmatpush.msra.mxu0 %v472
  %665 = vmatpush.msra.mxu0 %v471
  %666 = vmatpush.msra.mxu0 %v470
  %667 = vmatpush.msra.mxu0 %v469
  %668 = vmatpush.msra.mxu0 %v468
  %669 = vmatpush.msra.mxu0 %v467
  %670 = vmatpush.msra.mxu0 %v466
  %671 = vmatpush.msra.mxu0 %v465
  %672 = vmatpush.msra.mxu0 %v464
  %673 = vmatpush.msra.mxu0 %v463
  %674 = vmatpush.msra.mxu0 %v462
  %675 = vmatpush.msra.mxu0 %v461
  %676 = vmatpush.msra.mxu0 %v460
  %677 = vmatpush.msra.mxu0 %v459
  %678 = vmatpush.msra.mxu0 %v458
  %679 = vmatmul.f32.gmra.mxu0 %v642
  %v680 = vpop.f32.mrf.mxu0
  %v681 = vadd.f32 %v661, %v680
  %682 = vdwg.mxu0
  %v683 = vmul.f32 %v681, 0.0625
  %v684 = vld [vmem:[%s2] sm:$0x3]
  %v686 = vsel %vm579, %v683, 0
  %688 = vmatpush.msra.mxu0 0.0
  %689 = vmatpush.msra.mxu0 0.0
  %690 = vmatpush.msra.mxu0 0.0
  %691 = vmatpush.msra.mxu0 0.0
  %692 = vmatpush.msra.mxu0 0.0
  %693 = vmatpush.msra.mxu0 0.0
  %694 = vmatpush.msra.mxu0 0.0
  %695 = vmatpush.msra.mxu0 0.0
  %696 = vmatpush.msra.mxu0 0.0
  %697 = vmatpush.msra.mxu0 0.0
  %698 = vmatpush.msra.mxu0 0.0
  %699 = vmatpush.msra.mxu0 0.0
  %700 = vmatpush.msra.mxu0 %v521
  %701 = vmatpush.msra.mxu0 %v519
  %702 = vmatpush.msra.mxu0 %v517
  %703 = vmatpush.msra.mxu0 %v515
  %704 = vmatmul.f32.gmra.mxu0 %v686
  %v705 = vpop.f32.mrf.mxu0
  %v706 = vadd.f32 1e-05, %v705
  %707 = vdwg.mxu0
  %708 = vmatpush.msra.mxu0 0.0
  %709 = vmatpush.msra.mxu0 0.0
  %710 = vmatpush.msra.mxu0 0.0
  %711 = vmatpush.msra.mxu0 0.0
  %712 = vmatpush.msra.mxu0 0.0
  %713 = vmatpush.msra.mxu0 0.0
  %714 = vmatpush.msra.mxu0 0.0
  %715 = vmatpush.msra.mxu0 0.0
  %716 = vmatpush.msra.mxu0 0.0
  %717 = vmatpush.msra.mxu0 0.0
  %718 = vmatpush.msra.mxu0 0.0
  %719 = vmatpush.msra.mxu0 0.0
  %720 = vmatpush.msra.mxu0 %v522
  %721 = vmatpush.msra.mxu0 %v520
  %722 = vmatpush.msra.mxu0 %v518
  %723 = vmatpush.msra.mxu0 %v516
  %724 = vmatmul.f32.gmra.mxu0 %v686
  %v725 = vpop.f32.mrf.mxu0
  %v726 = vadd.f32 1e-05, %v725
  %727 = vdwg.mxu0
  %v728 = vrsqrt.pop %v706
  %v729 = vmul.f32 %v728, %v706
  %v730 = vmul.f32 %v729, %v728
  %v731 = vmul.f32 0.5, %v730
  %v732 = vsub.f32 1.5, %v731
  %v733 = vmul.f32 %v728, %v732
  %vm734 = vweird.f32 %v706
  %vm735 = vweird.f32 %v728
  %vm736 = vmor %vm734, %vm735
  %v737 = vsel %vm736, %v728, %v733
  %v738 = vrsqrt.pop %v726
  %v739 = vmul.f32 %v738, %v726
  %v740 = vmul.f32 %v739, %v738
  %v741 = vmul.f32 0.5, %v740
  %v742 = vsub.f32 1.5, %v741
  %v743 = vmul.f32 %v738, %v742
  %vm744 = vweird.f32 %v726
  %vm745 = vweird.f32 %v738
  %vm746 = vmor %vm744, %vm745
  %v747 = vsel %vm746, %v738, %v743
  %v750 = vrot.slane %v747, 7
  %vm751 = vcmask 1040384
  %v752 = vsel %vm751, %v737, %v750
  %v754 = vmul.f32 %v684, %v752
  %v756 = vperm.slane %v754, 0
  %v757 = vperm.slane %v754, 1
  %v760 = vmul.f32 %v625, %v756
  %v761 = vmul.f32 %v626, %v757
  %v762 = vld [vmem:[%s3] sm:$0x3]
  %v764 = vperm.slane %v762, 0
  %v765 = vperm.slane %v762, 1
  %v768 = vadd.f32 %v760, %v764
  %v769 = vadd.f32 %v761, %v765
  %v770 = vmax.f32 %v769, 0.0
  %vm771 = vcmp.ne.f32.partialorder %v769, %v769
  %v772 = vadd.f32 %v769, 0.0
  %v773 = vand.u32 2147483647, %v769
  %v774 = vsub.f32 0.0, %v773
  %v775 = vmul.f32 %v774, 1.442695
  %v776 = vpow.pop %v775
  %v777 = vadd.f32 %v776, 1.0
  %v778 = vlog2.pop %v777
  %v779 = vmul.f32 %v778, 0.6931472
  %v780 = vmul.f32 -0.5, %v776
  %v781 = vadd.f32 %v780, 1.0
  %v782 = vmul.f32 %v781, %v776
  %v783 = vand.u32 2147483647, %v776
  %vm784 = vcmp.lt.f32.partialorder %v783, 0.0004427343
  %v785 = vsel %vm784, %v782, %v779
  %v786 = vadd.f32 %v770, %v785
  %v787 = vsel %vm771, %v772, %v786
  %v788 = vadd.f32 %v787, 1e-10
  %v789 = vld [vmem:[%s4] sm:$0x3]
  %v790 = vmul.f32 %v789, %v789
  %v791 = vld [vmem:[%s4 + $0x2] sm:$0x3]
  %v792 = vadd.f32 %v789, %v791
  %v793 = vmul.f32 %v791, %v791
  %v794 = vadd.f32 %v790, %v793
  %v795 = vld [vmem:[%s4 + $0x4] sm:$0x3]
  %v796 = vadd.f32 %v792, %v795
  %v797 = vmul.f32 %v795, %v795
  %v798 = vadd.f32 %v794, %v797
  %v799 = vld [vmem:[%s4 + $0x6] sm:$0x3]
  %v800 = vadd.f32 %v796, %v799
  %v801 = vmul.f32 %v799, %v799
  %v802 = vadd.f32 %v798, %v801
  %v803 = vmul.f32 %v800, 0.25
  %v804 = vmul.f32 %v802, 0.25
  %v805 = vmul.f32 %v788, %v788
  %v806 = vsub.f32 %v805, 1.0
  %v807 = vmul.f32 %v806, 0.5
  %v808 = vmul.f32 %v807, %v804
  %v809 = vmul.f32 %v768, %v788
  %v810 = vmul.f32 %v809, %v803
  %v811 = vadd.f32 %v808, %v810
  %v812 = vmul.f32 %v768, 0.5
  %v813 = vmul.f32 %v812, %v768
  %v814 = vlog2.pop %v788
  %v815 = vmul.f32 %v814, 0.6931472
  %v816 = vsub.f32 %v813, %v815
  %v817 = vadd.f32 %v811, %v816
  %818 = vst [vmem:[%s5] sm:$0x3] %v768
  %v819 = vsel %vm523, %v817, 0.0
  %820 = vadd.xlane.f32.xlu0 %v819
  %v821 = vpop.xlane.xlu0 %820
  %vm822 = vcmask 1024
  %823 = vst.msk [vmem:[%s6] sm:$0x3] %vm822, %v821
  // Predicated region
  $region22: #{forward.1} parent=0 // pred_check
    _
  $region23: #{forward.1} parent=0 // pred_check_branch
    %825 = sbr.rel (0) target = $region25
  $region24: #{forward.1} parent=0 // pred_region
    _
  $region25: #{forward.1} parent=0 // pred_fallthru
    _
  // Predicated region
  $region26: #{forward.1} parent=0 // pred_check
    _
  $region27: #{forward.1} parent=0 // pred_check_branch
    %827 = sbr.rel (0) target = $region29
  $region28: #{forward.1} parent=0 // pred_region
    _
  $region29: #{forward.1} parent=0 // pred_fallthru
    _
  // Predicated region
  $region30: #{forward.1} parent=0 // pred_check
    _
  $region31: #{forward.1} parent=0 // pred_check_branch
    %829 = sbr.rel (0) target = $region33
  $region32: #{forward.1} parent=0 // pred_region
    _
  $region33: #{forward.1} parent=0 // pred_fallthru
    _
  // Predicated region
  $region34: #{forward.1} parent=0 // pred_check
    _
  $region35: #{forward.1} parent=0 // pred_check_branch
    %831 = sbr.rel (0) target = $region37
  $region36: #{forward.1} parent=0 // pred_region
    _
  $region37: #{forward.1} parent=0 // pred_fallthru
    _

</llo_original>
